<compile_context>
chip_gen: v5e
topology: v5e:2x2
jax: 0.10.0
libtpu: 0.0.40
codegen_flags: <defaults>
</compile_context>

<pallas_src>
import functools
import math

import jax
import jax.numpy as jnp
import numpy as np
from jax.experimental import pallas as pl
from jax.experimental.pallas import tpu as pltpu


def _mha_pool_kernel(q_ref, k2_ref, wq_ref, bq_ref, wkv_ref, bkv_ref,
                     out_ref, attn_ref, *, b, l, n_head, d_k, d_v):
    """Single-step kernel: all heads fused.

    Ref shapes:
      q_ref   : (b, d_q)
      k2_ref  : (b*l, d_ko)
      wq_ref  : (d_q, n_head*d_k)          bq_ref  : (1, n_head*d_k)      (pre-scaled by 1/temp)
      wkv_ref : (d_ko, n_head*(d_k+d_v))   bkv_ref : (1, n_head*(d_k+d_v))
      out_ref : (b, n_head*d_v)            attn_ref: (b*l, n_head)
    """
    nk = n_head * d_k
    nv = n_head * d_v

    # ---- fused, lane-dense projections (MXU) --------------------------------------------
    # qs already carries the 1/sqrt(d_k) scale (folded into wq/bq by the wrapper).
    qs = jnp.dot(q_ref[...], wq_ref[...],
                 preferred_element_type=jnp.float32) + bq_ref[...]          # (b, nk)
    kv = jnp.dot(k2_ref[...], wkv_ref[...],
                 preferred_element_type=jnp.float32) + bkv_ref[...]         # (b*l, nk+nv)
    ks = kv[:, :nk]                                                         # (b*l, nk)
    vs = kv[:, nk:]                                                         # (b*l, nv)

    # ---- per-head scores via MXU segment-sum --------------------------------------------
    # g_mat[c, h] = 1 iff feature column c belongs to head h (c in [h*d_k, (h+1)*d_k)).
    c_idx = jax.lax.broadcasted_iota(jnp.int32, (nk, n_head), 0)
    h_idx = jax.lax.broadcasted_iota(jnp.int32, (nk, n_head), 1)
    off_g = c_idx - h_idx * d_k
    g_mat = ((off_g >= 0) & (off_g < d_k)).astype(jnp.float32)              # (nk, n_head)

    prod = ks.reshape(b, l, nk) * qs[:, None, :]                            # (b, l, nk)
    scores = jnp.dot(prod.reshape(b * l, nk), g_mat,
                     preferred_element_type=jnp.float32)                    # (b*l, n_head)

    # ---- softmax over l (grouped per batch) ----------------------------------------------
    s3 = scores.reshape(b, l, n_head)
    m = jnp.max(s3, axis=1, keepdims=True)
    e = jnp.exp(s3 - m)
    denom = jnp.sum(e, axis=1, keepdims=True)
    attn3 = e * pl.reciprocal(denom, approx=True)                           # (b, l, n_head)
    attn_flat = attn3.reshape(b * l, n_head)

    # ---- context: expand attn to feature columns (MXU), weight V, reduce over l ----------
    # e_mat[h, c] = 1 iff output column c belongs to head h.
    r_idx = jax.lax.broadcasted_iota(jnp.int32, (n_head, nv), 0)
    cc_idx = jax.lax.broadcasted_iota(jnp.int32, (n_head, nv), 1)
    off_e = cc_idx - r_idx * d_v
    e_mat = ((off_e >= 0) & (off_e < d_v)).astype(jnp.float32)              # (n_head, nv)

    a_exp = jnp.dot(attn_flat, e_mat, preferred_element_type=jnp.float32)   # (b*l, nv)
    ctx = a_exp.reshape(b, l, nv) * vs.reshape(b, l, nv)                    # (b, l, nv)
    out = jnp.sum(ctx, axis=1)                                              # (b, nv)

    out_ref[...] = out.astype(out_ref.dtype)
    attn_ref[...] = attn_flat.astype(attn_ref.dtype)


def multihead_att_pool(q, k, params, n_head):
    """q: (b, d_q), k: (b, l, d_ko).  Returns (out (b, n_head*d_v), attn (n_head*b, l))."""
    b, d_q = q.shape
    _, l, d_ko = k.shape
    assert d_ko % n_head == 0
    d_k = d_ko // n_head
    d_v = d_k
    nk = n_head * d_k
    nv = n_head * d_v
    inv_temp = 1.0 / math.sqrt(d_k)

    wq, bq, wk, bk, wv, bv = params  # PyTorch Linear layout: W (out, in), b (out,)

    # Wrapper-side layout plumbing (free): fold temperature, fuse weights/biases, flatten k.
    wq_f = (wq.T * inv_temp).astype(jnp.float32)                  # (d_q, nk), pre-scaled
    bq_f = (bq * inv_temp).reshape(1, nk).astype(jnp.float32)     # (1, nk),  pre-scaled
    wkv_f = jnp.concatenate([wk.T, wv.T], axis=1).astype(jnp.float32)        # (d_ko, nk+nv)
    bkv_f = jnp.concatenate([bk, bv]).reshape(1, nk + nv).astype(jnp.float32)
    k2 = k.reshape(b * l, d_ko)

    kernel = functools.partial(_mha_pool_kernel, b=b, l=l, n_head=n_head, d_k=d_k, d_v=d_v)

    out, attn_flat = pl.pallas_call(
        kernel,
        grid=(1,),
        in_specs=[
            pl.BlockSpec((b, d_q), lambda i: (0, 0)),
            pl.BlockSpec((b * l, d_ko), lambda i: (0, 0)),
            pl.BlockSpec((d_q, nk), lambda i: (0, 0)),
            pl.BlockSpec((1, nk), lambda i: (0, 0)),
            pl.BlockSpec((d_ko, nk + nv), lambda i: (0, 0)),
            pl.BlockSpec((1, nk + nv), lambda i: (0, 0)),
        ],
        out_specs=[
            pl.BlockSpec((b, nv), lambda i: (0, 0)),
            pl.BlockSpec((b * l, n_head), lambda i: (0, 0)),
        ],
        out_shape=[
            jax.ShapeDtypeStruct((b, nv), jnp.float32),
            jax.ShapeDtypeStruct((b * l, n_head), jnp.float32),
        ],
        compiler_params=pltpu.CompilerParams(dimension_semantics=("arbitrary",)),
    )(q, k2, wq_f, bq_f, wkv_f, bkv_f)

    # attn: (b*l, n_head) -> (n_head*b, l).  Tiny (256 B) permute kept in the wrapper: the
    # head axis lives in lanes inside the kernel, while the required attn layout wants it
    # in rows; `out` already leaves the kernel in its final layout.
    attn = jnp.transpose(attn_flat.reshape(b, l, n_head), (2, 0, 1)).reshape(n_head * b, l)
    return out, attn


def _xavier_uniform(key, out_f, in_f):
    a = math.sqrt(6.0 / (in_f + out_f))
    return jax.random.uniform(key, (out_f, in_f), jnp.float32, minval=-a, maxval=a)


def _reference(q, k, params, n_head):
    """Pure-JAX reference that mirrors the PyTorch forward exactly (eval mode)."""
    wq, bq, wk, bk, wv, bv = params
    b, d_q = q.shape
    _, l, d_ko = k.shape
    d_k = d_ko // n_head
    d_v = d_k
    qs = (q @ wq.T + bq).reshape(b, n_head, d_k)
    ks = (k @ wk.T + bk).reshape(b, l, n_head, d_k)
    vs = (k @ wv.T + bv).reshape(b, l, n_head, d_v)
    qs = jnp.transpose(qs, (1, 0, 2)).reshape(n_head * b, d_k)
    ks = jnp.transpose(ks, (2, 0, 1, 3)).reshape(n_head * b, l, d_k)
    vs = jnp.transpose(vs, (2, 0, 1, 3)).reshape(n_head * b, l, d_v)
    attn = jnp.sum(qs[:, None, :] * ks, axis=2) / math.sqrt(d_k)
    attn = jax.nn.softmax(attn, axis=1)
    output = jnp.sum(attn[:, :, None] * vs, axis=1)
    output = jnp.transpose(output.reshape(n_head, b, d_v), (1, 0, 2)).reshape(b, n_head * d_v)
    return output, attn


if __name__ == "__main__":
    # Small shapes: batch=2, seq=8, d_q_original=32, d_k_original=64, n_head=4.
    n_head = 4
    d_q_original = 32
    d_k_original = 64
    b, l = 2, 8

    key = jax.random.PRNGKey(0)
    kq, kk, k1, k2, k3 = jax.random.split(key, 5)

    q = jax.random.normal(kq, (b, d_q_original), jnp.float32)
    k = jax.random.normal(kk, (b, l, d_k_original), jnp.float32)

    d_k = d_k_original // n_head
    params = (
        _xavier_uniform(k1, n_head * d_k, d_q_original),  # w_qs.weight
        jnp.zeros((n_head * d_k,), jnp.float32),          # w_qs.bias
        _xavier_uniform(k2, n_head * d_k, d_k_original),  # w_ks.weight
        jnp.zeros((n_head * d_k,), jnp.float32),          # w_ks.bias
        _xavier_uniform(k3, n_head * d_k, d_k_original),  # w_vs.weight
        jnp.zeros((n_head * d_k,), jnp.float32),          # w_vs.bias
    )

    out, attn = multihead_att_pool(q, k, params, n_head)
    jax.block_until_ready(out)
    jax.block_until_ready(attn)

    out_ref, attn_ref = _reference(q, k, params, n_head)
    # slightly loosened tolerance to accommodate the EUP approximate reciprocal
    np.testing.assert_allclose(np.asarray(out), np.asarray(out_ref), rtol=2e-3, atol=2e-3)
    np.testing.assert_allclose(np.asarray(attn), np.asarray(attn_ref), rtol=2e-3, atol=2e-3)

    print("KERNEL_OK")
</pallas_src>

<mosaic_0001>
module attributes {stable_mosaic.version = 11 : i64} {
  func.func @_mha_pool_kernel(%arg0: i32, %arg1: memref<2x32xf32, #tpu.memory_space<vmem>>, %arg2: memref<16x64xf32, #tpu.memory_space<vmem>>, %arg3: memref<32x64xf32, #tpu.memory_space<vmem>>, %arg4: memref<1x64xf32, #tpu.memory_space<vmem>>, %arg5: memref<64x128xf32, #tpu.memory_space<vmem>>, %arg6: memref<1x128xf32, #tpu.memory_space<vmem>>, %arg7: memref<2x64xf32, #tpu.memory_space<vmem>>, %arg8: memref<16x4xf32, #tpu.memory_space<vmem>>) attributes {dimension_semantics = [#tpu.dimension_semantics<arbitrary>], iteration_bounds = array<i64: 1>, scalar_prefetch = 0 : i64, scratch_operands = 0 : i64, tpu.core_type = #tpu.core_type<tc>, window_params = [{pipeline_mode = #tpu.pipeline_mode<synchronous>, transform_indices = @transform_0, window_bounds = array<i64: 2, 32>}, {pipeline_mode = #tpu.pipeline_mode<synchronous>, transform_indices = @transform_1, window_bounds = array<i64: 16, 64>}, {pipeline_mode = #tpu.pipeline_mode<synchronous>, transform_indices = @transform_2, window_bounds = array<i64: 32, 64>}, {pipeline_mode = #tpu.pipeline_mode<synchronous>, transform_indices = @transform_3, window_bounds = array<i64: 1, 64>}, {pipeline_mode = #tpu.pipeline_mode<synchronous>, transform_indices = @transform_4, window_bounds = array<i64: 64, 128>}, {pipeline_mode = #tpu.pipeline_mode<synchronous>, transform_indices = @transform_5, window_bounds = array<i64: 1, 128>}, {pipeline_mode = #tpu.pipeline_mode<synchronous>, transform_indices = @transform_6, window_bounds = array<i64: 2, 64>}, {pipeline_mode = #tpu.pipeline_mode<synchronous>, transform_indices = @transform_7, window_bounds = array<i64: 16, 4>}]} {
    %c0 = arith.constant 0 : index
    %c0_0 = arith.constant 0 : index
    %0 = vector.load %arg1[%c0, %c0_0] : memref<2x32xf32, #tpu.memory_space<vmem>>, vector<2x32xf32>
    %c0_1 = arith.constant 0 : index
    %c0_2 = arith.constant 0 : index
    %1 = vector.load %arg3[%c0_1, %c0_2] : memref<32x64xf32, #tpu.memory_space<vmem>>, vector<32x64xf32>
    %cst = arith.constant dense<0.000000e+00> : vector<2x64xf32>
    %2 = tpu.matmul %0, %1, %cst {dimension_numbers = #tpu.dot_dimension_numbers<[1], [0], [0], [1], [0, 0, 1, 1], [], []>} : vector<2x32xf32>, vector<32x64xf32>, vector<2x64xf32> -> vector<2x64xf32>
    %c0_3 = arith.constant 0 : index
    %c0_4 = arith.constant 0 : index
    %3 = vector.load %arg4[%c0_3, %c0_4] : memref<1x64xf32, #tpu.memory_space<vmem>>, vector<1x64xf32>
    %4 = vector.broadcast %3 : vector<1x64xf32> to vector<2x64xf32>
    %5 = arith.addf %2, %4 : vector<2x64xf32>
    %c0_5 = arith.constant 0 : index
    %c0_6 = arith.constant 0 : index
    %6 = vector.load %arg2[%c0_5, %c0_6] : memref<16x64xf32, #tpu.memory_space<vmem>>, vector<16x64xf32>
    %c0_7 = arith.constant 0 : index
    %c0_8 = arith.constant 0 : index
    %7 = vector.load %arg5[%c0_7, %c0_8] : memref<64x128xf32, #tpu.memory_space<vmem>>, vector<64x128xf32>
    %cst_9 = arith.constant dense<0.000000e+00> : vector<16x128xf32>
    %8 = tpu.matmul %6, %7, %cst_9 {dimension_numbers = #tpu.dot_dimension_numbers<[1], [0], [0], [1], [0, 0, 1, 1], [], []>} : vector<16x64xf32>, vector<64x128xf32>, vector<16x128xf32> -> vector<16x128xf32>
    %c0_10 = arith.constant 0 : index
    %c0_11 = arith.constant 0 : index
    %9 = vector.load %arg6[%c0_10, %c0_11] : memref<1x128xf32, #tpu.memory_space<vmem>>, vector<1x128xf32>
    %10 = vector.broadcast %9 : vector<1x128xf32> to vector<16x128xf32>
    %11 = arith.addf %8, %10 : vector<16x128xf32>
    %12 = vector.extract_strided_slice %11 {offsets = [0, 0], sizes = [16, 64], strides = [1, 1]} : vector<16x128xf32> to vector<16x64xf32>
    %13 = vector.extract_strided_slice %11 {offsets = [0, 64], sizes = [16, 64], strides = [1, 1]} : vector<16x128xf32> to vector<16x64xf32>
    %14 = tpu.iota {dimensions = array<i32: 0>} : vector<64x4xi32>
    %15 = tpu.iota {dimensions = array<i32: 1>} : vector<64x4xi32>
    %c16_i32 = arith.constant 16 : i32
    %16 = vector.broadcast %c16_i32 : i32 to vector<64x4xi32>
    %17 = arith.muli %15, %16 : vector<64x4xi32>
    %18 = arith.subi %14, %17 : vector<64x4xi32>
    %c0_i32 = arith.constant 0 : i32
    %19 = vector.broadcast %c0_i32 : i32 to vector<64x4xi32>
    %20 = arith.cmpi sge, %18, %19 : vector<64x4xi32>
    %c16_i32_12 = arith.constant 16 : i32
    %21 = vector.broadcast %c16_i32_12 : i32 to vector<64x4xi32>
    %22 = arith.cmpi slt, %18, %21 : vector<64x4xi32>
    %23 = arith.andi %20, %22 : vector<64x4xi1>
    %24 = arith.extui %23 : vector<64x4xi1> to vector<64x4xi32>
    %25 = arith.sitofp %24 : vector<64x4xi32> to vector<64x4xf32>
    %26 = vector.shape_cast %12 : vector<16x64xf32> to vector<2x8x64xf32>
    %27 = vector.shape_cast %5 : vector<2x64xf32> to vector<2x1x64xf32>
    %28 = vector.broadcast %27 : vector<2x1x64xf32> to vector<2x8x64xf32>
    %29 = arith.mulf %26, %28 : vector<2x8x64xf32>
    %30 = vector.shape_cast %29 : vector<2x8x64xf32> to vector<16x64xf32>
    %cst_13 = arith.constant dense<0.000000e+00> : vector<16x4xf32>
    %31 = tpu.matmul %30, %25, %cst_13 {dimension_numbers = #tpu.dot_dimension_numbers<[1], [0], [0], [1], [0, 0, 1, 1], [], []>} : vector<16x64xf32>, vector<64x4xf32>, vector<16x4xf32> -> vector<16x4xf32>
    %32 = vector.shape_cast %31 : vector<16x4xf32> to vector<2x8x4xf32>
    %cst_14 = arith.constant dense<0xFF800000> : vector<2x4xf32>
    %33 = vector.multi_reduction <maximumf>, %32, %cst_14 [1] : vector<2x8x4xf32> to vector<2x4xf32>
    %34 = vector.shape_cast %33 : vector<2x4xf32> to vector<2x1x4xf32>
    %35 = vector.broadcast %34 : vector<2x1x4xf32> to vector<2x8x4xf32>
    %36 = arith.subf %32, %35 : vector<2x8x4xf32>
    %37 = math.exp %36 : vector<2x8x4xf32>
    %cst_15 = arith.constant dense<0.000000e+00> : vector<2x4xf32>
    %38 = vector.multi_reduction <add>, %37, %cst_15 [1] : vector<2x8x4xf32> to vector<2x4xf32>
    %39 = vector.shape_cast %38 : vector<2x4xf32> to vector<2x1x4xf32>
    %40 = tpu.reciprocal %39 {approx = true} : vector<2x1x4xf32> -> vector<2x1x4xf32>
    %41 = vector.broadcast %40 : vector<2x1x4xf32> to vector<2x8x4xf32>
    %42 = arith.mulf %37, %41 : vector<2x8x4xf32>
    %43 = vector.shape_cast %42 : vector<2x8x4xf32> to vector<16x4xf32>
    %44 = tpu.iota {dimensions = array<i32: 0>} : vector<4x64xi32>
    %45 = tpu.iota {dimensions = array<i32: 1>} : vector<4x64xi32>
    %c16_i32_16 = arith.constant 16 : i32
    %46 = vector.broadcast %c16_i32_16 : i32 to vector<4x64xi32>
    %47 = arith.muli %44, %46 : vector<4x64xi32>
    %48 = arith.subi %45, %47 : vector<4x64xi32>
    %c0_i32_17 = arith.constant 0 : i32
    %49 = vector.broadcast %c0_i32_17 : i32 to vector<4x64xi32>
    %50 = arith.cmpi sge, %48, %49 : vector<4x64xi32>
    %c16_i32_18 = arith.constant 16 : i32
    %51 = vector.broadcast %c16_i32_18 : i32 to vector<4x64xi32>
    %52 = arith.cmpi slt, %48, %51 : vector<4x64xi32>
    %53 = arith.andi %50, %52 : vector<4x64xi1>
    %54 = arith.extui %53 : vector<4x64xi1> to vector<4x64xi32>
    %55 = arith.sitofp %54 : vector<4x64xi32> to vector<4x64xf32>
    %cst_19 = arith.constant dense<0.000000e+00> : vector<16x64xf32>
    %56 = tpu.matmul %43, %55, %cst_19 {dimension_numbers = #tpu.dot_dimension_numbers<[1], [0], [0], [1], [0, 0, 1, 1], [], []>} : vector<16x4xf32>, vector<4x64xf32>, vector<16x64xf32> -> vector<16x64xf32>
    %57 = vector.shape_cast %56 : vector<16x64xf32> to vector<2x8x64xf32>
    %58 = vector.shape_cast %13 : vector<16x64xf32> to vector<2x8x64xf32>
    %59 = arith.mulf %57, %58 : vector<2x8x64xf32>
    %cst_20 = arith.constant dense<0.000000e+00> : vector<2x64xf32>
    %60 = vector.multi_reduction <add>, %59, %cst_20 [1] : vector<2x8x64xf32> to vector<2x64xf32>
    %c0_21 = arith.constant 0 : index
    %c0_22 = arith.constant 0 : index
    %61 = vector.load %arg7[%c0_21, %c0_22] : memref<2x64xf32, #tpu.memory_space<vmem>>, vector<2x64xf32>
    tpu.vector_store %arg7[%c0_21, %c0_22], %60 {strides = array<i32>} : memref<2x64xf32, #tpu.memory_space<vmem>>, vector<2x64xf32>,
    %c0_23 = arith.constant 0 : index
    %c0_24 = arith.constant 0 : index
    %62 = vector.load %arg8[%c0_23, %c0_24] : memref<16x4xf32, #tpu.memory_space<vmem>>, vector<16x4xf32>
    tpu.vector_store %arg8[%c0_23, %c0_24], %43 {strides = array<i32>} : memref<16x4xf32, #tpu.memory_space<vmem>>, vector<16x4xf32>,
    return
  }
  func.func @transform_0(%arg0: i32) -> (i32, i32) {
    %c0_i32 = arith.constant 0 : i32
    %c0_i32_0 = arith.constant 0 : i32
    %c0_i32_1 = arith.constant 0 : i32
    return %c0_i32, %c0_i32_0 : i32, i32
  }
  func.func @transform_1(%arg0: i32) -> (i32, i32) {
    %c0_i32 = arith.constant 0 : i32
    %c0_i32_0 = arith.constant 0 : i32
    %c0_i32_1 = arith.constant 0 : i32
    return %c0_i32, %c0_i32_0 : i32, i32
  }
  func.func @transform_2(%arg0: i32) -> (i32, i32) {
    %c0_i32 = arith.constant 0 : i32
    %c0_i32_0 = arith.constant 0 : i32
    %c0_i32_1 = arith.constant 0 : i32
    return %c0_i32, %c0_i32_0 : i32, i32
  }
  func.func @transform_3(%arg0: i32) -> (i32, i32) {
    %c0_i32 = arith.constant 0 : i32
    %c0_i32_0 = arith.constant 0 : i32
    %c0_i32_1 = arith.constant 0 : i32
    return %c0_i32, %c0_i32_0 : i32, i32
  }
  func.func @transform_4(%arg0: i32) -> (i32, i32) {
    %c0_i32 = arith.constant 0 : i32
    %c0_i32_0 = arith.constant 0 : i32
    %c0_i32_1 = arith.constant 0 : i32
    return %c0_i32, %c0_i32_0 : i32, i32
  }
  func.func @transform_5(%arg0: i32) -> (i32, i32) {
    %c0_i32 = arith.constant 0 : i32
    %c0_i32_0 = arith.constant 0 : i32
    %c0_i32_1 = arith.constant 0 : i32
    return %c0_i32, %c0_i32_0 : i32, i32
  }
  func.func @transform_6(%arg0: i32) -> (i32, i32) {
    %c0_i32 = arith.constant 0 : i32
    %c0_i32_0 = arith.constant 0 : i32
    %c0_i32_1 = arith.constant 0 : i32
    return %c0_i32, %c0_i32_0 : i32, i32
  }
  func.func @transform_7(%arg0: i32) -> (i32, i32) {
    %c0_i32 = arith.constant 0 : i32
    %c0_i32_0 = arith.constant 0 : i32
    %c0_i32_1 = arith.constant 0 : i32
    return %c0_i32, %c0_i32_0 : i32, i32
  }
}

</mosaic_0001>

<llo_original>
// kernel: tpu_custom_call.1
$region0: #{tpu_custom_call.1}
  #allocation0 [shape = 'u32[]', space=smem, size = 0x4, offset = 0x4, fixed_abs, tag = 'smem constant byte address 0x4 - core index']
  #allocation1 [shape = 'u32[72,128]{1,0:T(1,128)}', space=vmem, size = 0x9000, scoped, tag = 'internal scratch']
  %s0 = inlined_call_operand.hbm [shape: f32[2,32], index: 0, kind: input, shape index: {}]
  %s1 = inlined_call_operand.hbm [shape: f32[16,64], index: 1, kind: input, shape index: {}]
  %s2 = inlined_call_operand.hbm [shape: f32[32,64], index: 2, kind: input, shape index: {}]
  %s3 = inlined_call_operand.vmem [shape: f32[1,64], index: 3, kind: input, shape index: {}]
  %s4 = inlined_call_operand.hbm [shape: f32[64,128], index: 4, kind: input, shape index: {}]
  %s5 = inlined_call_operand.vmem [shape: f32[1,128], index: 5, kind: input, shape index: {}]
  %s6 = inlined_call_operand.hbm [shape: f32[2,64], index: 6, kind: output, shape index: {0}]
  %s7 = inlined_call_operand.vmem [shape: f32[16,4], index: 7, kind: output, shape index: {1}]
  %8 = xla_tuple %s6, %s7
  %s9 = sld [smem:[#allocation0]]
  $region58: #{tpu_custom_call.1} parent=0
    _
  %s11 = ssub.s32 1, %s9
  %s12 = scalar_select 0, %s11, %s9
  $region1: #{tpu_custom_call.1} parent=0
    #allocation2 [shape = 'u8[1024]{0}', space=vmem, size = 0x400, scoped, tag = 'input window, operand 0, single buffered']
    #allocation3 [shape = 's32[1]{0}', space=sflag, size = 0x4, scoped, tag = 'scoped memory for tpu_custom_call.1']
    #allocation4 [shape = 's32[1]{0}', space=sflag, size = 0x4, scoped, tag = 'scoped memory for tpu_custom_call.1']
    #allocation5 [shape = 'u8[8192]{0}', space=vmem, size = 0x2000, scoped, tag = 'input window, operand 1, single buffered']
    #allocation6 [shape = 's32[1]{0}', space=sflag, size = 0x4, scoped, tag = 'scoped memory for tpu_custom_call.1']
    #allocation7 [shape = 'u8[16384]{0}', space=vmem, size = 0x4000, scoped, tag = 'input window, operand 2, single buffered']
    #allocation8 [shape = 'u8[32768]{0}', space=vmem, size = 0x8000, scoped, tag = 'input window, operand 4, single buffered']
    #allocation9 [shape = 's32[1]{0}', space=sflag, size = 0x4, scoped, tag = 'scoped memory for tpu_custom_call.1']
    #allocation10 [shape = 'u8[1024]{0}', space=vmem, size = 0x400, scoped, tag = 'output window, operand 0, single buffered']
    %13 = vsyncpa [#allocation3], 0
    %14 = vsyncpa [#allocation6], 0
    %15 = vsyncpa [#allocation9], 0
    %16 = vsyncpa [#allocation4], 0
    // Predicated region
    $region2: #{tpu_custom_call.1} parent=1 // pred_check
      _
    $region3: #{tpu_custom_call.1} parent=1 // pred_check_branch
      %18 = sbr.rel (0) target = $region5
    $region4: #{tpu_custom_call.1} parent=1 // pred_region
      %20 = vsyncadd [#allocation3], 0
      %s22 = sshll.u32 %s0, 4
      %s23 = int_to_ptr.hbm [resolvable:$true] %s22
      %s24 = sshll.u32 [#allocation2], 4
      %s25 = int_to_ptr.vmem [resolvable:$true] %s24
      %27 = dma.hbm_to_vmem [thread:$0]  %s23, 32, %s25, [#allocation3]
    $region5: #{tpu_custom_call.1} parent=1 // pred_fallthru
      _
    // Predicated region
    $region6: #{tpu_custom_call.1} parent=1 // pred_check
      _
    $region7: #{tpu_custom_call.1} parent=1 // pred_check_branch
      %29 = sbr.rel (0) target = $region9
    $region8: #{tpu_custom_call.1} parent=1 // pred_region
      %31 = vsyncadd [#allocation6], 0
      %s32 = sshll.u32 %s1, 4
      %s33 = int_to_ptr.hbm [resolvable:$true] %s32
      %s34 = sshll.u32 [#allocation5], 4
      %s35 = int_to_ptr.vmem [resolvable:$true] %s34
      %40 = dma.hbm_to_vmem [thread:$0]  %s33, 256, %s35, [#allocation6], 128, 128, 8
    $region9: #{tpu_custom_call.1} parent=1 // pred_fallthru
      _
    // Predicated region
    $region10: #{tpu_custom_call.1} parent=1 // pred_check
      _
    $region11: #{tpu_custom_call.1} parent=1 // pred_check_branch
      %42 = sbr.rel (0) target = $region13
    $region12: #{tpu_custom_call.1} parent=1 // pred_region
      %44 = vsyncadd [#allocation6], 0
      %s45 = sshll.u32 %s2, 4
      %s46 = int_to_ptr.hbm [resolvable:$true] %s45
      %s47 = sshll.u32 [#allocation7], 4
      %s48 = int_to_ptr.vmem [resolvable:$true] %s47
      %53 = dma.hbm_to_vmem [thread:$0]  %s46, 512, %s48, [#allocation6], 128, 128, 8
    $region13: #{tpu_custom_call.1} parent=1 // pred_fallthru
      _
    // Predicated region
    $region14: #{tpu_custom_call.1} parent=1 // pred_check
      _
    $region15: #{tpu_custom_call.1} parent=1 // pred_check_branch
      %55 = sbr.rel (0) target = $region17
    $region16: #{tpu_custom_call.1} parent=1 // pred_region
      _
    $region17: #{tpu_custom_call.1} parent=1 // pred_fallthru
      _
    // Predicated region
    $region18: #{tpu_custom_call.1} parent=1 // pred_check
      _
    $region19: #{tpu_custom_call.1} parent=1 // pred_check_branch
      %57 = sbr.rel (0) target = $region21
    $region20: #{tpu_custom_call.1} parent=1 // pred_region
      %59 = vsyncadd [#allocation9], 0
      %s60 = sshll.u32 %s4, 4
      %s61 = int_to_ptr.hbm [resolvable:$true] %s60
      %s62 = sshll.u32 [#allocation8], 4
      %s63 = int_to_ptr.vmem [resolvable:$true] %s62
      %68 = dma.hbm_to_vmem [thread:$0]  %s61, 1024, %s63, [#allocation9], 128, 128, 8
    $region21: #{tpu_custom_call.1} parent=1 // pred_fallthru
      _
    // Predicated region
    $region22: #{tpu_custom_call.1} parent=1 // pred_check
      _
    $region23: #{tpu_custom_call.1} parent=1 // pred_check_branch
      %70 = sbr.rel (0) target = $region25
    $region24: #{tpu_custom_call.1} parent=1 // pred_region
      _
    $region25: #{tpu_custom_call.1} parent=1 // pred_fallthru
      _
    // Predicated region
    $region26: #{tpu_custom_call.1} parent=1 // pred_check
      _
    $region27: #{tpu_custom_call.1} parent=1 // pred_check_branch
      %72 = sbr.rel (0) target = $region29
    $region28: #{tpu_custom_call.1} parent=1 // pred_region
      %74 = dma.done [#allocation3], 32
    $region29: #{tpu_custom_call.1} parent=1 // pred_fallthru
      _
    // Predicated region
    $region30: #{tpu_custom_call.1} parent=1 // pred_check
      _
    $region31: #{tpu_custom_call.1} parent=1 // pred_check_branch
      %76 = sbr.rel (0) target = $region33
    $region32: #{tpu_custom_call.1} parent=1 // pred_region
      %78 = dma.done [#allocation6], 256
    $region33: #{tpu_custom_call.1} parent=1 // pred_fallthru
      _
    // Predicated region
    $region34: #{tpu_custom_call.1} parent=1 // pred_check
      _
    $region35: #{tpu_custom_call.1} parent=1 // pred_check_branch
      %80 = sbr.rel (0) target = $region37
    $region36: #{tpu_custom_call.1} parent=1 // pred_region
      %82 = dma.done [#allocation6], 512
    $region37: #{tpu_custom_call.1} parent=1 // pred_fallthru
      _
    // Predicated region
    $region38: #{tpu_custom_call.1} parent=1 // pred_check
      _
    $region39: #{tpu_custom_call.1} parent=1 // pred_check_branch
      %84 = sbr.rel (0) target = $region41
    $region40: #{tpu_custom_call.1} parent=1 // pred_region
      %86 = dma.done [#allocation9], 1024
    $region41: #{tpu_custom_call.1} parent=1 // pred_fallthru
      _
    %v87 = vld [vmem:[#allocation2] sm:$0x3]
    %v88 = vld [vmem:[#allocation7] sm:$0xff]
    %v89 = vld [vmem:[#allocation7 + $0x8] sm:$0xff]
    %v90 = vld [vmem:[#allocation7 + $0x10] sm:$0xff]
    %v91 = vld [vmem:[#allocation7 + $0x18] sm:$0xff]
    %v92 = vld [vmem:[%s3] sm:$0x1]
    %v94 = vperm.slane %v92, 0
    %vm96 = vcmask 261120
    %v98 = vsel %vm96, %v87, 0
    %100 = vmatpush.msra.mxu0 0.0
    %101 = vmatpush.msra.mxu0 0.0
    %102 = vmatpush.msra.mxu0 0.0
    %103 = vmatpush.msra.mxu0 0.0
    %104 = vmatpush.msra.mxu0 0.0
    %105 = vmatpush.msra.mxu0 0.0
    %106 = vmatpush.msra.mxu0 0.0
    %107 = vmatpush.msra.mxu0 0.0
    %108 = vmatpush.msra.mxu0 0.0
    %109 = vmatpush.msra.mxu0 0.0
    %110 = vmatpush.msra.mxu0 0.0
    %111 = vmatpush.msra.mxu0 0.0
    %112 = vmatpush.msra.mxu0 %v91
    %113 = vmatpush.msra.mxu0 %v90
    %114 = vmatpush.msra.mxu0 %v89
    %115 = vmatpush.msra.mxu0 %v88
    %116 = vmatmul.f32.gmra.mxu0 %v98
    %v117 = vpop.f32.mrf.mxu0
    %v118 = vadd.f32 %v94, %v117
    %119 = vdwg.mxu0
    %v120 = vld [vmem:[#allocation5] sm:$0xff]
    %v121 = vld [vmem:[#allocation5 + $0x8] sm:$0xff]
    %v122 = vld [vmem:[#allocation8] sm:$0xff]
    %v123 = vld [vmem:[#allocation8 + $0x8] sm:$0xff]
    %v124 = vld [vmem:[#allocation8 + $0x10] sm:$0xff]
    %v125 = vld [vmem:[#allocation8 + $0x18] sm:$0xff]
    %v126 = vld [vmem:[#allocation8 + $0x20] sm:$0xff]
    %v127 = vld [vmem:[#allocation8 + $0x28] sm:$0xff]
    %v128 = vld [vmem:[#allocation8 + $0x30] sm:$0xff]
    %v129 = vld [vmem:[#allocation8 + $0x38] sm:$0xff]
    %v130 = vld [vmem:[%s5] sm:$0x1]
    %v132 = vperm.slane %v130, 0
    %vm134 = vcmask 523264
    %v136 = vsel %vm134, %v120, 0
    %v139 = vsel %vm134, %v121, 0
    %141 = vmatpush.msra.mxu0 0.0
    %142 = vmatpush.msra.mxu0 0.0
    %143 = vmatpush.msra.mxu0 0.0
    %144 = vmatpush.msra.mxu0 0.0
    %145 = vmatpush.msra.mxu0 0.0
    %146 = vmatpush.msra.mxu0 0.0
    %147 = vmatpush.msra.mxu0 0.0
    %148 = vmatpush.msra.mxu0 0.0
    %149 = vmatpush.msra.mxu0 %v129
    %150 = vmatpush.msra.mxu0 %v128
    %151 = vmatpush.msra.mxu0 %v127
    %152 = vmatpush.msra.mxu0 %v126
    %153 = vmatpush.msra.mxu0 %v125
    %154 = vmatpush.msra.mxu0 %v124
    %155 = vmatpush.msra.mxu0 %v123
    %156 = vmatpush.msra.mxu0 %v122
    %157 = vmatmul.f32.gmra.mxu0 %v136
    %v158 = vpop.f32.mrf.mxu0
    %v159 = vadd.f32 %v132, %v158
    %160 = vmatmul.f32.gmra.mxu0 %v139
    %v161 = vpop.f32.mrf.mxu0
    %v162 = vadd.f32 %v132, %v161
    %163 = vdwg.mxu0
    %v164 = vlaneseq
    %v165 = vshrl.u32 %v164, 7
    %v166 = vadd.s32 %v165, 8
    %v167 = vadd.s32 %v165, 16
    %v168 = vadd.s32 %v165, 24
    %v169 = vadd.s32 %v165, 32
    %v170 = vadd.s32 %v165, 40
    %v171 = vadd.s32 %v165, 48
    %v172 = vadd.s32 %v165, 56
    %v173 = vlaneseq
    %v174 = vand.u32 %v173, 127
    %v175 = vmul.u32 %v174, 16
    %v176 = vsub.s32 %v165, %v175
    %v177 = vsub.s32 %v166, %v175
    %v178 = vsub.s32 %v167, %v175
    %v179 = vsub.s32 %v168, %v175
    %v180 = vsub.s32 %v169, %v175
    %v181 = vsub.s32 %v170, %v175
    %v182 = vsub.s32 %v171, %v175
    %v183 = vsub.s32 %v172, %v175
    %vm184 = vcmp.ge.s32.totalorder %v176, 0
    %vm185 = vcmp.ge.s32.totalorder %v177, 0
    %vm186 = vcmp.ge.s32.totalorder %v178, 0
    %vm187 = vcmp.ge.s32.totalorder %v179, 0
    %vm188 = vcmp.ge.s32.totalorder %v180, 0
    %vm189 = vcmp.ge.s32.totalorder %v181, 0
    %vm190 = vcmp.ge.s32.totalorder %v182, 0
    %vm191 = vcmp.ge.s32.totalorder %v183, 0
    %vm192 = vcmp.lt.s32.totalorder %v176, 16
    %vm193 = vcmp.lt.s32.totalorder %v177, 16
    %vm194 = vcmp.lt.s32.totalorder %v178, 16
    %vm195 = vcmp.lt.s32.totalorder %v179, 16
    %vm196 = vcmp.lt.s32.totalorder %v180, 16
    %vm197 = vcmp.lt.s32.totalorder %v181, 16
    %vm198 = vcmp.lt.s32.totalorder %v182, 16
    %vm199 = vcmp.lt.s32.totalorder %v183, 16
    %vm200 = vmand %vm184, %vm192
    %vm201 = vmand %vm185, %vm193
    %vm202 = vmand %vm186, %vm194
    %vm203 = vmand %vm187, %vm195
    %vm204 = vmand %vm188, %vm196
    %vm205 = vmand %vm189, %vm197
    %vm206 = vmand %vm190, %vm198
    %vm207 = vmand %vm191, %vm199
    %v208 = vsel %vm200, 1, 0
    %v209 = vsel %vm201, 1, 0
    %v210 = vsel %vm202, 1, 0
    %v211 = vsel %vm203, 1, 0
    %v212 = vsel %vm204, 1, 0
    %v213 = vsel %vm205, 1, 0
    %v214 = vsel %vm206, 1, 0
    %v215 = vsel %vm207, 1, 0
    %v216 = vcvt.s32.f32 %v208
    %v217 = vcvt.s32.f32 %v209
    %v218 = vcvt.s32.f32 %v210
    %v219 = vcvt.s32.f32 %v211
    %v220 = vcvt.s32.f32 %v212
    %v221 = vcvt.s32.f32 %v213
    %v222 = vcvt.s32.f32 %v214
    %v223 = vcvt.s32.f32 %v215
    %v225 = vrot.slane %v118, 1
    %v226 = vperm.slane %v118, 0
    %v227 = vperm.slane %v225, 0
    %v230 = vmul.f32 %v159, %v226
    %v231 = vmul.f32 %v162, %v227
    %v233 = vsel %vm134, %v230, 0
    %v236 = vsel %vm134, %v231, 0
    %238 = vmatpush.msra.mxu0 0.0
    %239 = vmatpush.msra.mxu0 0.0
    %240 = vmatpush.msra.mxu0 0.0
    %241 = vmatpush.msra.mxu0 0.0
    %242 = vmatpush.msra.mxu0 0.0
    %243 = vmatpush.msra.mxu0 0.0
    %244 = vmatpush.msra.mxu0 0.0
    %245 = vmatpush.msra.mxu0 0.0
    %246 = vmatpush.msra.mxu0 %v223
    %247 = vmatpush.msra.mxu0 %v222
    %248 = vmatpush.msra.mxu0 %v221
    %249 = vmatpush.msra.mxu0 %v220
    %250 = vmatpush.msra.mxu0 %v219
    %251 = vmatpush.msra.mxu0 %v218
    %252 = vmatpush.msra.mxu0 %v217
    %253 = vmatpush.msra.mxu0 %v216
    %254 = vmatmul.f32.gmra.mxu0 %v233
    %v255 = vpop.f32.mrf.mxu0
    %v256 = vadd.f32 0.0, %v255
    %257 = vmatmul.f32.gmra.mxu0 %v236
    %v258 = vpop.f32.mrf.mxu0
    %v259 = vadd.f32 0.0, %v258
    %260 = vdwg.mxu0
    %vm261 = vcmask 31744
    %v262 = vsel %vm261, %v256, -inf
    %v263 = vrot.slane %v262, 4
    %v264 = vmax.f32 %v262, %v263
    %v265 = vrot.slane %v264, 2
    %v266 = vmax.f32 %v264, %v265
    %v267 = vrot.slane %v266, 1
    %v268 = vmax.f32 %v266, %v267
    %v269 = vsel %vm261, %v259, -inf
    %v270 = vrot.slane %v269, 4
    %v271 = vmax.f32 %v269, %v270
    %v272 = vrot.slane %v271, 2
    %v273 = vmax.f32 %v271, %v272
    %v274 = vrot.slane %v273, 1
    %v275 = vmax.f32 %v273, %v274
    %v276 = vsub.f32 %v256, %v268
    %v277 = vsub.f32 %v259, %v275
    %v278 = vmul.f32 %v276, 1.442695
    %v279 = vpow.pop %v278
    %v280 = vmul.f32 %v277, 1.442695
    %v281 = vpow.pop %v280
    %v282 = vsel %vm261, %v279, 0.0
    %v283 = vrot.slane %v282, 4
    %v284 = vadd.f32 %v282, %v283
    %v285 = vrot.slane %v284, 2
    %v286 = vadd.f32 %v284, %v285
    %v287 = vrot.slane %v286, 1
    %v288 = vadd.f32 %v286, %v287
    %v289 = vsel %vm261, %v281, 0.0
    %v290 = vrot.slane %v289, 4
    %v291 = vadd.f32 %v289, %v290
    %v292 = vrot.slane %v291, 2
    %v293 = vadd.f32 %v291, %v292
    %v294 = vrot.slane %v293, 1
    %v295 = vadd.f32 %v293, %v294
    %v296 = vrcp.pop %v288
    %v297 = vrcp.pop %v295
    %v298 = vmul.f32 %v279, %v296
    %v299 = vmul.f32 %v281, %v297
    %v300 = vmul.u32 %v165, 16
    %v301 = vsub.s32 %v174, %v300
    %vm302 = vcmp.ge.s32.totalorder %v301, 0
    %vm303 = vcmp.lt.s32.totalorder %v301, 16
    %vm304 = vmand %vm302, %vm303
    %v305 = vsel %vm304, 1, 0
    %v306 = vcvt.s32.f32 %v305
    %v308 = vsel %vm261, %v298, 0
    %v311 = vsel %vm261, %v299, 0
    %vm313 = vcmask 1043456
    %v315 = vsel %vm313, %v306, 0
    %317 = vmatpush.msra.mxu0 0.0
    %318 = vmatpush.msra.mxu0 0.0
    %319 = vmatpush.msra.mxu0 0.0
    %320 = vmatpush.msra.mxu0 0.0
    %321 = vmatpush.msra.mxu0 0.0
    %322 = vmatpush.msra.mxu0 0.0
    %323 = vmatpush.msra.mxu0 0.0
    %324 = vmatpush.msra.mxu0 0.0
    %325 = vmatpush.msra.mxu0 0.0
    %326 = vmatpush.msra.mxu0 0.0
    %327 = vmatpush.msra.mxu0 0.0
    %328 = vmatpush.msra.mxu0 0.0
    %329 = vmatpush.msra.mxu0 0.0
    %330 = vmatpush.msra.mxu0 0.0
    %331 = vmatpush.msra.mxu0 0.0
    %332 = vmatpush.msra.mxu0 %v315
    %333 = vmatmul.f32.gmra.mxu0 %v308
    %v334 = vpop.f32.mrf.mxu0
    %v335 = vadd.f32 0.0, %v334
    %336 = vmatmul.f32.gmra.mxu0 %v311
    %v337 = vpop.f32.mrf.mxu0
    %v338 = vadd.f32 0.0, %v337
    %339 = vdwg.mxu0
    %342 = vrot.lane.b32.xlu0 %v159, 64
    %v343 = vpop.permute.xlu0 %342
    %344 = vrot.lane.b32.xlu0 %v162, 64
    %v345 = vpop.permute.xlu0 %344
    %v348 = vmul.f32 %v335, %v343
    %v349 = vmul.f32 %v338, %v345
    %v350 = vsel %vm134, %v348, 0.0
    %v351 = vrot.slane %v350, 4
    %v352 = vadd.f32 %v350, %v351
    %v353 = vrot.slane %v352, 2
    %v354 = vadd.f32 %v352, %v353
    %v355 = vrot.slane %v354, 1
    %v356 = vadd.f32 %v354, %v355
    %v357 = vsel %vm134, %v349, 0.0
    %v358 = vrot.slane %v357, 4
    %v359 = vadd.f32 %v357, %v358
    %v360 = vrot.slane %v359, 2
    %v361 = vadd.f32 %v359, %v360
    %v362 = vrot.slane %v361, 1
    %v363 = vadd.f32 %v361, %v362
    %vm366 = vcmask 1041409
    %v367 = vsel %vm366, %v363, %v356
    %vm369 = vcmask 517120
    %370 = vst.msk [vmem:[#allocation10] sm:$0x3] %vm369, %v367
    %371 = vst.msk [vmem:[%s7] sm:$0xff] %vm261, %v298
    %372 = vst.msk [vmem:[%s7 + $0x8] sm:$0xff] %vm261, %v299
    // Predicated region
    $region42: #{tpu_custom_call.1} parent=1 // pred_check
      _
    $region43: #{tpu_custom_call.1} parent=1 // pred_check_branch
      %374 = sbr.rel (0) target = $region45
    $region44: #{tpu_custom_call.1} parent=1 // pred_region
      %376 = vsyncadd [#allocation4], 0
      %s378 = sshll.u32 [#allocation10], 4
      %s379 = int_to_ptr.vmem [resolvable:$true] %s378
      %s380 = sshll.u32 %s6, 4
      %s381 = int_to_ptr.hbm [resolvable:$true] %s380
      %383 = dma.vmem_to_hbm [thread:$0]  %s379, 32, %s381, [#allocation4]
    $region45: #{tpu_custom_call.1} parent=1 // pred_fallthru
      _
    // Predicated region
    $region46: #{tpu_custom_call.1} parent=1 // pred_check
      _
    $region47: #{tpu_custom_call.1} parent=1 // pred_check_branch
      %385 = sbr.rel (0) target = $region49
    $region48: #{tpu_custom_call.1} parent=1 // pred_region
      _
    $region49: #{tpu_custom_call.1} parent=1 // pred_fallthru
      _
    // Predicated region
    $region50: #{tpu_custom_call.1} parent=1 // pred_check
      _
    $region51: #{tpu_custom_call.1} parent=1 // pred_check_branch
      %387 = sbr.rel (0) target = $region53
    $region52: #{tpu_custom_call.1} parent=1 // pred_region
      %389 = dma.done [#allocation4], 32
    $region53: #{tpu_custom_call.1} parent=1 // pred_fallthru
      _
    // Predicated region
    $region54: #{tpu_custom_call.1} parent=1 // pred_check
      _
    $region55: #{tpu_custom_call.1} parent=1 // pred_check_branch
      %391 = sbr.rel (0) target = $region57
    $region56: #{tpu_custom_call.1} parent=1 // pred_region
      _
    $region57: #{tpu_custom_call.1} parent=1 // pred_fallthru
      _
    %392 = vsyncpa [#allocation3], 1
    %393 = vsyncpa [#allocation6], 1
    %394 = vsyncpa [#allocation9], 1
    %395 = vsyncpa [#allocation4], 1

</llo_original>
